<compile_context>
chip_gen: v5e
topology: v5e:2x2
jax: 0.10.0
libtpu: 0.0.40
codegen_flags: <defaults>
</compile_context>

<pallas_src>
import jax
import jax.numpy as jnp
from jax import lax
from jax.experimental import pallas as pl
from jax.experimental.pallas import tpu as pltpu


def _round_up(x, m):
    return (x + m - 1) // m * m


def _pad_hidden(h):
    """Lane padding: 128 for H<=128, 256 for 128<H<=256 (v6e/v7x MXU), else
    next multiple of 128."""
    if h <= 128:
        return 128
    if h <= 256:
        return 256
    return _round_up(h, 128)


def _unroll_for(t):
    """Full unroll only for short static trip counts (vreg pressure)."""
    return t if t <= 16 else 8


def _vmem_bytes_estimate(t_enc, t_dec, b_pad, h_pad, in_size, x_bytes,
                         w_bytes):
    io = 2 * (  # BlockSpec double-buffering of inputs/outputs
        (t_enc + t_dec) * b_pad * in_size * x_bytes       # enc_x, dec_x
        + b_pad * h_pad * 4                               # h0
        + 2 * (in_size * h_pad + h_pad * h_pad) * w_bytes  # W_ih, W_hh x2 RNNs
        + 2 * h_pad * 4                                    # biases
        + t_dec * b_pad * h_pad * 4)                       # decoder output
    scratch = (b_pad * h_pad + t_enc * b_pad * h_pad) * 4  # h carry + enc proj
    return io + scratch


def seq2seq_kernel(enc_x_ref, dec_x_ref, h0_ref,
                   enc_wih_ref, enc_whh_ref, enc_b_ref,
                   dec_wih_ref, dec_whh_ref, dec_b_ref,
                   dec_out_ref,
                   h_scr, enc_proj_scr):
    """Fused encoder->decoder tanh-RNN forward (time flattened into sublanes).

    enc_x_ref   : (T_enc*Bp, I)   encoder inputs (batch padded, time-flattened)
    dec_x_ref   : (T_dec*Bp, I)   decoder inputs
    h0_ref      : (Bp, Hp)        initial hidden state (f32)
    *_wih_ref   : (I, Hp)         W_ih^T (zero-padded cols), f32 or bf16
    *_whh_ref   : (Hp, Hp)        W_hh^T (zero-padded), f32 or bf16
    *_b_ref     : (1, Hp)         b_ih + b_hh (f32, zero-padded)
    dec_out_ref : (T_dec*Bp, Hp)  decoder per-step hidden states (f32)
    h_scr       : (Bp, Hp)        VMEM hidden-state carry (f32)
    enc_proj_scr: (T_enc*Bp, Hp)  hoisted encoder input projection (f32)
    """
    bp, hp = h0_ref.shape
    t_enc = enc_x_ref.shape[0] // bp
    t_dec = dec_x_ref.shape[0] // bp
    mm_dtype = enc_whh_ref.dtype  # matmul operand dtype (f32 or bf16)

    # ---- Phase 1: time-independent input projections, one big MXU matmul
    # per RNN, hoisted off the serial critical path.  The decoder projection
    # is written directly into the (VMEM-resident) output block. -----------
    enc_proj_scr[...] = (
        jnp.dot(enc_x_ref[...], enc_wih_ref[...],
                preferred_element_type=jnp.float32) + enc_b_ref[...])
    dec_out_ref[...] = (
        jnp.dot(dec_x_ref[...], dec_wih_ref[...],
                preferred_element_type=jnp.float32) + dec_b_ref[...])

    # ---- Phase 2: encoder recurrence.  Only the final hidden state is
    # needed downstream; it stays in VMEM scratch (no HBM writes here). -----
    h_scr[...] = h0_ref[...]
    enc_whh = enc_whh_ref[...]          # loop-invariant weight load (hoisted)

    def enc_step(t, carry):
        row = pl.multiple_of(t * bp, bp)
        z = enc_proj_scr[pl.ds(row, bp), :] + jnp.dot(
            h_scr[...].astype(mm_dtype), enc_whh,
            preferred_element_type=jnp.float32)
        h_scr[...] = jnp.tanh(z)
        return carry

    lax.fori_loop(0, t_enc, enc_step, 0, unroll=_unroll_for(t_enc))

    # ---- Phase 3: decoder recurrence, seeded from the encoder hidden state
    # already in VMEM.  dec_out_ref holds x@W_ih + b and is updated in place
    # (lane-dense Hp stores). ------------------------------------------------
    dec_whh = dec_whh_ref[...]

    def dec_step(t, carry):
        row = pl.multiple_of(t * bp, bp)
        z = dec_out_ref[pl.ds(row, bp), :] + jnp.dot(
            h_scr[...].astype(mm_dtype), dec_whh,
            preferred_element_type=jnp.float32)
        h_new = jnp.tanh(z)
        h_scr[...] = h_new
        dec_out_ref[pl.ds(row, bp), :] = h_new.astype(dec_out_ref.dtype)
        return carry

    lax.fori_loop(0, t_dec, dec_step, 0, unroll=_unroll_for(t_dec))


def seq2seq_forward(params_enc, params_dec, enc_input, hidden, dec_input,
                    *, matmul_dtype=jnp.float32):
    """Mirrors Seq2Seq.forward; returns decoder_out of shape (T_dec, B, H)."""
    t_enc, batch, in_size = enc_input.shape
    t_dec = dec_input.shape[0]
    hidden_size = params_enc["w_ih_t"].shape[1]

    b_pad = _round_up(max(batch, 8), 8)    # fill sublane groups
    h_pad = _pad_hidden(hidden_size)       # lane-dense stores / MXU width
    dh = h_pad - hidden_size

    def prep_x(x):
        # (T, B, I) -> batch-pad -> flatten time into the sublane axis.
        x = jnp.pad(x, ((0, 0), (0, b_pad - batch), (0, 0)))
        return x.reshape(x.shape[0] * b_pad, in_size).astype(matmul_dtype)

    def prep_params(p):
        w_ih = jnp.pad(p["w_ih_t"], ((0, 0), (0, dh))).astype(matmul_dtype)
        w_hh = jnp.pad(p["w_hh_t"], ((0, dh), (0, dh))).astype(matmul_dtype)
        b = jnp.pad(p["b"], ((0, 0), (0, dh)))            # bias stays f32
        return w_ih, w_hh, b

    enc_x = prep_x(enc_input)
    dec_x = prep_x(dec_input)
    h0 = jnp.pad(hidden[0], ((0, b_pad - batch), (0, dh)))
    enc_wih, enc_whh, enc_b = prep_params(params_enc)
    dec_wih, dec_whh, dec_b = prep_params(params_dec)

    est = _vmem_bytes_estimate(t_enc, t_dec, b_pad, h_pad, in_size,
                               jnp.dtype(matmul_dtype).itemsize,
                               jnp.dtype(matmul_dtype).itemsize)
    vmem_limit = int(max(16 * 2**20, min(2 * est, 64 * 2**20)))

    def full2d(shape):
        return pl.BlockSpec(shape, lambda i: (0, 0))

    dec_out_flat = pl.pallas_call(
        seq2seq_kernel,
        out_shape=jax.ShapeDtypeStruct((t_dec * b_pad, h_pad), jnp.float32),
        grid=(1,),
        in_specs=[
            full2d((t_enc * b_pad, in_size)),   # enc_x
            full2d((t_dec * b_pad, in_size)),   # dec_x
            full2d((b_pad, h_pad)),             # h0
            full2d((in_size, h_pad)),           # enc W_ih^T
            full2d((h_pad, h_pad)),             # enc W_hh^T
            full2d((1, h_pad)),                 # enc bias
            full2d((in_size, h_pad)),           # dec W_ih^T
            full2d((h_pad, h_pad)),             # dec W_hh^T
            full2d((1, h_pad)),                 # dec bias
        ],
        out_specs=full2d((t_dec * b_pad, h_pad)),
        scratch_shapes=[
            pltpu.VMEM((b_pad, h_pad), jnp.float32),           # h carry
            pltpu.VMEM((t_enc * b_pad, h_pad), jnp.float32),   # enc x-proj
        ],
        compiler_params=pltpu.CompilerParams(
            dimension_semantics=("arbitrary",),
            vmem_limit_bytes=vmem_limit),
    )(enc_x, dec_x, h0, enc_wih, enc_whh, enc_b, dec_wih, dec_whh, dec_b)

    dec_out = dec_out_flat.reshape(t_dec, b_pad, h_pad)
    return dec_out[:, :batch, :hidden_size]


def init_rnn_params(key, input_size, hidden_size):
    """Deterministic nn.RNN-like parameter init: U(-1/sqrt(H), 1/sqrt(H))."""
    k1, k2, k3, k4 = jax.random.split(key, 4)
    bound = 1.0 / jnp.sqrt(hidden_size)
    w_ih = jax.random.uniform(k1, (hidden_size, input_size), jnp.float32,
                              -bound, bound)
    w_hh = jax.random.uniform(k2, (hidden_size, hidden_size), jnp.float32,
                              -bound, bound)
    b_ih = jax.random.uniform(k3, (hidden_size,), jnp.float32, -bound, bound)
    b_hh = jax.random.uniform(k4, (hidden_size,), jnp.float32, -bound, bound)
    return {
        "w_ih_t": w_ih.T,                          # (I, H)
        "w_hh_t": w_hh.T,                          # (H, H)
        "b": (b_ih + b_hh).reshape(1, hidden_size),
    }


def rnn_reference(x, h0, w_ih_t, w_hh_t, b):
    """Pure-JAX reference for correctness checking."""
    def step(h, xt):
        h_new = jnp.tanh(xt @ w_ih_t + h @ w_hh_t + b)
        return h_new, h_new
    h_final, out = jax.lax.scan(step, h0, x)
    return out, h_final


if __name__ == "__main__":
    key = jax.random.PRNGKey(0)
    k_enc, k_dec, k_x, k_y, k_h = jax.random.split(key, 5)

    input_size = 8
    hidden_size = 32
    batch = 4
    t_enc = 6
    t_dec = 5

    params_enc = init_rnn_params(k_enc, input_size, hidden_size)
    params_dec = init_rnn_params(k_dec, input_size, hidden_size)

    enc_input = jax.random.normal(k_x, (t_enc, batch, input_size), jnp.float32)
    dec_input = jax.random.normal(k_y, (t_dec, batch, input_size), jnp.float32)
    hidden = jax.random.normal(k_h, (1, batch, hidden_size), jnp.float32)

    # Pure-JAX reference of the same recurrence.
    _, h_enc_ref = rnn_reference(enc_input, hidden[0], params_enc["w_ih_t"],
                                 params_enc["w_hh_t"], params_enc["b"])
    dec_out_ref, _ = rnn_reference(dec_input, h_enc_ref, params_dec["w_ih_t"],
                                   params_dec["w_hh_t"], params_dec["b"])

    # f32 path (exact vs reference).
    dec_out = seq2seq_forward(params_enc, params_dec, enc_input, hidden,
                              dec_input, matmul_dtype=jnp.float32)
    dec_out = jax.block_until_ready(dec_out)
    assert dec_out.shape == (t_dec, batch, hidden_size)
    assert jnp.allclose(dec_out, dec_out_ref, atol=1e-4, rtol=1e-4)

    # bf16-operand path (v6e/v7x-native MXU, f32 accumulation/tanh).
    dec_out_bf16 = seq2seq_forward(params_enc, params_dec, enc_input, hidden,
                                   dec_input, matmul_dtype=jnp.bfloat16)
    dec_out_bf16 = jax.block_until_ready(dec_out_bf16)
    assert dec_out_bf16.shape == (t_dec, batch, hidden_size)
    assert jnp.allclose(dec_out_bf16, dec_out_ref, atol=5e-2, rtol=5e-2)

    print("KERNEL_OK")
</pallas_src>

<mosaic_0001>
module attributes {stable_mosaic.version = 11 : i64} {
  func.func @seq2seq_kernel(%arg0: i32, %arg1: memref<48x8xf32, #tpu.memory_space<vmem>>, %arg2: memref<40x8xf32, #tpu.memory_space<vmem>>, %arg3: memref<8x128xf32, #tpu.memory_space<vmem>>, %arg4: memref<8x128xf32, #tpu.memory_space<vmem>>, %arg5: memref<128x128xf32, #tpu.memory_space<vmem>>, %arg6: memref<1x128xf32, #tpu.memory_space<vmem>>, %arg7: memref<8x128xf32, #tpu.memory_space<vmem>>, %arg8: memref<128x128xf32, #tpu.memory_space<vmem>>, %arg9: memref<1x128xf32, #tpu.memory_space<vmem>>, %arg10: memref<40x128xf32, #tpu.memory_space<vmem>>, %arg11: memref<8x128xf32, #tpu.memory_space<vmem>>, %arg12: memref<48x128xf32, #tpu.memory_space<vmem>>) attributes {dimension_semantics = [#tpu.dimension_semantics<arbitrary>], iteration_bounds = array<i64: 1>, scalar_prefetch = 0 : i64, scratch_operands = 2 : i64, tpu.core_type = #tpu.core_type<tc>, window_params = [{pipeline_mode = #tpu.pipeline_mode<synchronous>, transform_indices = @transform_0, window_bounds = array<i64: 48, 8>}, {pipeline_mode = #tpu.pipeline_mode<synchronous>, transform_indices = @transform_1, window_bounds = array<i64: 40, 8>}, {pipeline_mode = #tpu.pipeline_mode<synchronous>, transform_indices = @transform_2, window_bounds = array<i64: 8, 128>}, {pipeline_mode = #tpu.pipeline_mode<synchronous>, transform_indices = @transform_3, window_bounds = array<i64: 8, 128>}, {pipeline_mode = #tpu.pipeline_mode<synchronous>, transform_indices = @transform_4, window_bounds = array<i64: 128, 128>}, {pipeline_mode = #tpu.pipeline_mode<synchronous>, transform_indices = @transform_5, window_bounds = array<i64: 1, 128>}, {pipeline_mode = #tpu.pipeline_mode<synchronous>, transform_indices = @transform_6, window_bounds = array<i64: 8, 128>}, {pipeline_mode = #tpu.pipeline_mode<synchronous>, transform_indices = @transform_7, window_bounds = array<i64: 128, 128>}, {pipeline_mode = #tpu.pipeline_mode<synchronous>, transform_indices = @transform_8, window_bounds = array<i64: 1, 128>}, {pipeline_mode = #tpu.pipeline_mode<synchronous>, transform_indices = @transform_9, window_bounds = array<i64: 40, 128>}]} {
    %c0 = arith.constant 0 : index
    %c0_0 = arith.constant 0 : index
    %0 = vector.load %arg1[%c0, %c0_0] : memref<48x8xf32, #tpu.memory_space<vmem>>, vector<48x8xf32>
    %c0_1 = arith.constant 0 : index
    %c0_2 = arith.constant 0 : index
    %1 = vector.load %arg4[%c0_1, %c0_2] : memref<8x128xf32, #tpu.memory_space<vmem>>, vector<8x128xf32>
    %cst = arith.constant dense<0.000000e+00> : vector<48x128xf32>
    %2 = tpu.matmul %0, %1, %cst {dimension_numbers = #tpu.dot_dimension_numbers<[1], [0], [0], [1], [0, 0, 1, 1], [], []>} : vector<48x8xf32>, vector<8x128xf32>, vector<48x128xf32> -> vector<48x128xf32>
    %c0_3 = arith.constant 0 : index
    %c0_4 = arith.constant 0 : index
    %3 = vector.load %arg6[%c0_3, %c0_4] : memref<1x128xf32, #tpu.memory_space<vmem>>, vector<1x128xf32>
    %4 = vector.broadcast %3 : vector<1x128xf32> to vector<48x128xf32>
    %5 = arith.addf %2, %4 : vector<48x128xf32>
    %c0_5 = arith.constant 0 : index
    %c0_6 = arith.constant 0 : index
    %6 = vector.load %arg12[%c0_5, %c0_6] : memref<48x128xf32, #tpu.memory_space<vmem>>, vector<48x128xf32>
    tpu.vector_store %arg12[%c0_5, %c0_6], %5 {strides = array<i32>} : memref<48x128xf32, #tpu.memory_space<vmem>>, vector<48x128xf32>,
    %c0_7 = arith.constant 0 : index
    %c0_8 = arith.constant 0 : index
    %7 = vector.load %arg2[%c0_7, %c0_8] : memref<40x8xf32, #tpu.memory_space<vmem>>, vector<40x8xf32>
    %c0_9 = arith.constant 0 : index
    %c0_10 = arith.constant 0 : index
    %8 = vector.load %arg7[%c0_9, %c0_10] : memref<8x128xf32, #tpu.memory_space<vmem>>, vector<8x128xf32>
    %cst_11 = arith.constant dense<0.000000e+00> : vector<40x128xf32>
    %9 = tpu.matmul %7, %8, %cst_11 {dimension_numbers = #tpu.dot_dimension_numbers<[1], [0], [0], [1], [0, 0, 1, 1], [], []>} : vector<40x8xf32>, vector<8x128xf32>, vector<40x128xf32> -> vector<40x128xf32>
    %c0_12 = arith.constant 0 : index
    %c0_13 = arith.constant 0 : index
    %10 = vector.load %arg9[%c0_12, %c0_13] : memref<1x128xf32, #tpu.memory_space<vmem>>, vector<1x128xf32>
    %11 = vector.broadcast %10 : vector<1x128xf32> to vector<40x128xf32>
    %12 = arith.addf %9, %11 : vector<40x128xf32>
    %c0_14 = arith.constant 0 : index
    %c0_15 = arith.constant 0 : index
    %13 = vector.load %arg10[%c0_14, %c0_15] : memref<40x128xf32, #tpu.memory_space<vmem>>, vector<40x128xf32>
    tpu.vector_store %arg10[%c0_14, %c0_15], %12 {strides = array<i32>} : memref<40x128xf32, #tpu.memory_space<vmem>>, vector<40x128xf32>,
    %c0_16 = arith.constant 0 : index
    %c0_17 = arith.constant 0 : index
    %14 = vector.load %arg3[%c0_16, %c0_17] : memref<8x128xf32, #tpu.memory_space<vmem>>, vector<8x128xf32>
    %c0_18 = arith.constant 0 : index
    %c0_19 = arith.constant 0 : index
    %15 = vector.load %arg11[%c0_18, %c0_19] : memref<8x128xf32, #tpu.memory_space<vmem>>, vector<8x128xf32>
    tpu.vector_store %arg11[%c0_18, %c0_19], %14 {strides = array<i32>} : memref<8x128xf32, #tpu.memory_space<vmem>>, vector<8x128xf32>,
    %c0_20 = arith.constant 0 : index
    %c0_21 = arith.constant 0 : index
    %16 = vector.load %arg5[%c0_20, %c0_21] : memref<128x128xf32, #tpu.memory_space<vmem>>, vector<128x128xf32>
    %c0_i32 = arith.constant 0 : i32
    %c8_i32 = arith.constant 8 : i32
    %17 = arith.muli %c0_i32, %c8_i32 : i32
    %18 = tpu.assume_multiple %17, 8 : i32
    %19 = arith.index_cast %18 : i32 to index
    %c0_22 = arith.constant 0 : index
    %20 = vector.load %arg12[%19, %c0_22] : memref<48x128xf32, #tpu.memory_space<vmem>>, vector<8x128xf32>
    %c0_23 = arith.constant 0 : index
    %c0_24 = arith.constant 0 : index
    %21 = vector.load %arg11[%c0_23, %c0_24] : memref<8x128xf32, #tpu.memory_space<vmem>>, vector<8x128xf32>
    %cst_25 = arith.constant dense<0.000000e+00> : vector<8x128xf32>
    %22 = tpu.matmul %21, %16, %cst_25 {dimension_numbers = #tpu.dot_dimension_numbers<[1], [0], [0], [1], [0, 0, 1, 1], [], []>} : vector<8x128xf32>, vector<128x128xf32>, vector<8x128xf32> -> vector<8x128xf32>
    %23 = arith.addf %20, %22 : vector<8x128xf32>
    %24 = math.tanh %23 : vector<8x128xf32>
    %c0_26 = arith.constant 0 : index
    %c0_27 = arith.constant 0 : index
    %25 = vector.load %arg11[%c0_26, %c0_27] : memref<8x128xf32, #tpu.memory_space<vmem>>, vector<8x128xf32>
    tpu.vector_store %arg11[%c0_26, %c0_27], %24 {strides = array<i32>} : memref<8x128xf32, #tpu.memory_space<vmem>>, vector<8x128xf32>,
    %c1_i32 = arith.constant 1 : i32
    %c8_i32_28 = arith.constant 8 : i32
    %26 = arith.muli %c1_i32, %c8_i32_28 : i32
    %27 = tpu.assume_multiple %26, 8 : i32
    %28 = arith.index_cast %27 : i32 to index
    %c0_29 = arith.constant 0 : index
    %29 = vector.load %arg12[%28, %c0_29] : memref<48x128xf32, #tpu.memory_space<vmem>>, vector<8x128xf32>
    %c0_30 = arith.constant 0 : index
    %c0_31 = arith.constant 0 : index
    %30 = vector.load %arg11[%c0_30, %c0_31] : memref<8x128xf32, #tpu.memory_space<vmem>>, vector<8x128xf32>
    %cst_32 = arith.constant dense<0.000000e+00> : vector<8x128xf32>
    %31 = tpu.matmul %30, %16, %cst_32 {dimension_numbers = #tpu.dot_dimension_numbers<[1], [0], [0], [1], [0, 0, 1, 1], [], []>} : vector<8x128xf32>, vector<128x128xf32>, vector<8x128xf32> -> vector<8x128xf32>
    %32 = arith.addf %29, %31 : vector<8x128xf32>
    %33 = math.tanh %32 : vector<8x128xf32>
    %c0_33 = arith.constant 0 : index
    %c0_34 = arith.constant 0 : index
    %34 = vector.load %arg11[%c0_33, %c0_34] : memref<8x128xf32, #tpu.memory_space<vmem>>, vector<8x128xf32>
    tpu.vector_store %arg11[%c0_33, %c0_34], %33 {strides = array<i32>} : memref<8x128xf32, #tpu.memory_space<vmem>>, vector<8x128xf32>,
    %c2_i32 = arith.constant 2 : i32
    %c8_i32_35 = arith.constant 8 : i32
    %35 = arith.muli %c2_i32, %c8_i32_35 : i32
    %36 = tpu.assume_multiple %35, 8 : i32
    %37 = arith.index_cast %36 : i32 to index
    %c0_36 = arith.constant 0 : index
    %38 = vector.load %arg12[%37, %c0_36] : memref<48x128xf32, #tpu.memory_space<vmem>>, vector<8x128xf32>
    %c0_37 = arith.constant 0 : index
    %c0_38 = arith.constant 0 : index
    %39 = vector.load %arg11[%c0_37, %c0_38] : memref<8x128xf32, #tpu.memory_space<vmem>>, vector<8x128xf32>
    %cst_39 = arith.constant dense<0.000000e+00> : vector<8x128xf32>
    %40 = tpu.matmul %39, %16, %cst_39 {dimension_numbers = #tpu.dot_dimension_numbers<[1], [0], [0], [1], [0, 0, 1, 1], [], []>} : vector<8x128xf32>, vector<128x128xf32>, vector<8x128xf32> -> vector<8x128xf32>
    %41 = arith.addf %38, %40 : vector<8x128xf32>
    %42 = math.tanh %41 : vector<8x128xf32>
    %c0_40 = arith.constant 0 : index
    %c0_41 = arith.constant 0 : index
    %43 = vector.load %arg11[%c0_40, %c0_41] : memref<8x128xf32, #tpu.memory_space<vmem>>, vector<8x128xf32>
    tpu.vector_store %arg11[%c0_40, %c0_41], %42 {strides = array<i32>} : memref<8x128xf32, #tpu.memory_space<vmem>>, vector<8x128xf32>,
    %c3_i32 = arith.constant 3 : i32
    %c8_i32_42 = arith.constant 8 : i32
    %44 = arith.muli %c3_i32, %c8_i32_42 : i32
    %45 = tpu.assume_multiple %44, 8 : i32
    %46 = arith.index_cast %45 : i32 to index
    %c0_43 = arith.constant 0 : index
    %47 = vector.load %arg12[%46, %c0_43] : memref<48x128xf32, #tpu.memory_space<vmem>>, vector<8x128xf32>
    %c0_44 = arith.constant 0 : index
    %c0_45 = arith.constant 0 : index
    %48 = vector.load %arg11[%c0_44, %c0_45] : memref<8x128xf32, #tpu.memory_space<vmem>>, vector<8x128xf32>
    %cst_46 = arith.constant dense<0.000000e+00> : vector<8x128xf32>
    %49 = tpu.matmul %48, %16, %cst_46 {dimension_numbers = #tpu.dot_dimension_numbers<[1], [0], [0], [1], [0, 0, 1, 1], [], []>} : vector<8x128xf32>, vector<128x128xf32>, vector<8x128xf32> -> vector<8x128xf32>
    %50 = arith.addf %47, %49 : vector<8x128xf32>
    %51 = math.tanh %50 : vector<8x128xf32>
    %c0_47 = arith.constant 0 : index
    %c0_48 = arith.constant 0 : index
    %52 = vector.load %arg11[%c0_47, %c0_48] : memref<8x128xf32, #tpu.memory_space<vmem>>, vector<8x128xf32>
    tpu.vector_store %arg11[%c0_47, %c0_48], %51 {strides = array<i32>} : memref<8x128xf32, #tpu.memory_space<vmem>>, vector<8x128xf32>,
    %c4_i32 = arith.constant 4 : i32
    %c8_i32_49 = arith.constant 8 : i32
    %53 = arith.muli %c4_i32, %c8_i32_49 : i32
    %54 = tpu.assume_multiple %53, 8 : i32
    %55 = arith.index_cast %54 : i32 to index
    %c0_50 = arith.constant 0 : index
    %56 = vector.load %arg12[%55, %c0_50] : memref<48x128xf32, #tpu.memory_space<vmem>>, vector<8x128xf32>
    %c0_51 = arith.constant 0 : index
    %c0_52 = arith.constant 0 : index
    %57 = vector.load %arg11[%c0_51, %c0_52] : memref<8x128xf32, #tpu.memory_space<vmem>>, vector<8x128xf32>
    %cst_53 = arith.constant dense<0.000000e+00> : vector<8x128xf32>
    %58 = tpu.matmul %57, %16, %cst_53 {dimension_numbers = #tpu.dot_dimension_numbers<[1], [0], [0], [1], [0, 0, 1, 1], [], []>} : vector<8x128xf32>, vector<128x128xf32>, vector<8x128xf32> -> vector<8x128xf32>
    %59 = arith.addf %56, %58 : vector<8x128xf32>
    %60 = math.tanh %59 : vector<8x128xf32>
    %c0_54 = arith.constant 0 : index
    %c0_55 = arith.constant 0 : index
    %61 = vector.load %arg11[%c0_54, %c0_55] : memref<8x128xf32, #tpu.memory_space<vmem>>, vector<8x128xf32>
    tpu.vector_store %arg11[%c0_54, %c0_55], %60 {strides = array<i32>} : memref<8x128xf32, #tpu.memory_space<vmem>>, vector<8x128xf32>,
    %c5_i32 = arith.constant 5 : i32
    %c8_i32_56 = arith.constant 8 : i32
    %62 = arith.muli %c5_i32, %c8_i32_56 : i32
    %63 = tpu.assume_multiple %62, 8 : i32
    %64 = arith.index_cast %63 : i32 to index
    %c0_57 = arith.constant 0 : index
    %65 = vector.load %arg12[%64, %c0_57] : memref<48x128xf32, #tpu.memory_space<vmem>>, vector<8x128xf32>
    %c0_58 = arith.constant 0 : index
    %c0_59 = arith.constant 0 : index
    %66 = vector.load %arg11[%c0_58, %c0_59] : memref<8x128xf32, #tpu.memory_space<vmem>>, vector<8x128xf32>
    %cst_60 = arith.constant dense<0.000000e+00> : vector<8x128xf32>
    %67 = tpu.matmul %66, %16, %cst_60 {dimension_numbers = #tpu.dot_dimension_numbers<[1], [0], [0], [1], [0, 0, 1, 1], [], []>} : vector<8x128xf32>, vector<128x128xf32>, vector<8x128xf32> -> vector<8x128xf32>
    %68 = arith.addf %65, %67 : vector<8x128xf32>
    %69 = math.tanh %68 : vector<8x128xf32>
    %c0_61 = arith.constant 0 : index
    %c0_62 = arith.constant 0 : index
    %70 = vector.load %arg11[%c0_61, %c0_62] : memref<8x128xf32, #tpu.memory_space<vmem>>, vector<8x128xf32>
    tpu.vector_store %arg11[%c0_61, %c0_62], %69 {strides = array<i32>} : memref<8x128xf32, #tpu.memory_space<vmem>>, vector<8x128xf32>,
    %c6_i32 = arith.constant 6 : i32
    %c0_63 = arith.constant 0 : index
    %c0_64 = arith.constant 0 : index
    %71 = vector.load %arg8[%c0_63, %c0_64] : memref<128x128xf32, #tpu.memory_space<vmem>>, vector<128x128xf32>
    %c0_i32_65 = arith.constant 0 : i32
    %c8_i32_66 = arith.constant 8 : i32
    %72 = arith.muli %c0_i32_65, %c8_i32_66 : i32
    %73 = tpu.assume_multiple %72, 8 : i32
    %74 = arith.index_cast %73 : i32 to index
    %c0_67 = arith.constant 0 : index
    %75 = vector.load %arg10[%74, %c0_67] : memref<40x128xf32, #tpu.memory_space<vmem>>, vector<8x128xf32>
    %c0_68 = arith.constant 0 : index
    %c0_69 = arith.constant 0 : index
    %76 = vector.load %arg11[%c0_68, %c0_69] : memref<8x128xf32, #tpu.memory_space<vmem>>, vector<8x128xf32>
    %cst_70 = arith.constant dense<0.000000e+00> : vector<8x128xf32>
    %77 = tpu.matmul %76, %71, %cst_70 {dimension_numbers = #tpu.dot_dimension_numbers<[1], [0], [0], [1], [0, 0, 1, 1], [], []>} : vector<8x128xf32>, vector<128x128xf32>, vector<8x128xf32> -> vector<8x128xf32>
    %78 = arith.addf %75, %77 : vector<8x128xf32>
    %79 = math.tanh %78 : vector<8x128xf32>
    %c0_71 = arith.constant 0 : index
    %c0_72 = arith.constant 0 : index
    %80 = vector.load %arg11[%c0_71, %c0_72] : memref<8x128xf32, #tpu.memory_space<vmem>>, vector<8x128xf32>
    tpu.vector_store %arg11[%c0_71, %c0_72], %79 {strides = array<i32>} : memref<8x128xf32, #tpu.memory_space<vmem>>, vector<8x128xf32>,
    %81 = arith.index_cast %73 : i32 to index
    %c0_73 = arith.constant 0 : index
    %82 = vector.load %arg10[%81, %c0_73] : memref<40x128xf32, #tpu.memory_space<vmem>>, vector<8x128xf32>
    tpu.vector_store %arg10[%81, %c0_73], %79 {strides = array<i32>} : memref<40x128xf32, #tpu.memory_space<vmem>>, vector<8x128xf32>,
    %c1_i32_74 = arith.constant 1 : i32
    %c8_i32_75 = arith.constant 8 : i32
    %83 = arith.muli %c1_i32_74, %c8_i32_75 : i32
    %84 = tpu.assume_multiple %83, 8 : i32
    %85 = arith.index_cast %84 : i32 to index
    %c0_76 = arith.constant 0 : index
    %86 = vector.load %arg10[%85, %c0_76] : memref<40x128xf32, #tpu.memory_space<vmem>>, vector<8x128xf32>
    %c0_77 = arith.constant 0 : index
    %c0_78 = arith.constant 0 : index
    %87 = vector.load %arg11[%c0_77, %c0_78] : memref<8x128xf32, #tpu.memory_space<vmem>>, vector<8x128xf32>
    %cst_79 = arith.constant dense<0.000000e+00> : vector<8x128xf32>
    %88 = tpu.matmul %87, %71, %cst_79 {dimension_numbers = #tpu.dot_dimension_numbers<[1], [0], [0], [1], [0, 0, 1, 1], [], []>} : vector<8x128xf32>, vector<128x128xf32>, vector<8x128xf32> -> vector<8x128xf32>
    %89 = arith.addf %86, %88 : vector<8x128xf32>
    %90 = math.tanh %89 : vector<8x128xf32>
    %c0_80 = arith.constant 0 : index
    %c0_81 = arith.constant 0 : index
    %91 = vector.load %arg11[%c0_80, %c0_81] : memref<8x128xf32, #tpu.memory_space<vmem>>, vector<8x128xf32>
    tpu.vector_store %arg11[%c0_80, %c0_81], %90 {strides = array<i32>} : memref<8x128xf32, #tpu.memory_space<vmem>>, vector<8x128xf32>,
    %92 = arith.index_cast %84 : i32 to index
    %c0_82 = arith.constant 0 : index
    %93 = vector.load %arg10[%92, %c0_82] : memref<40x128xf32, #tpu.memory_space<vmem>>, vector<8x128xf32>
    tpu.vector_store %arg10[%92, %c0_82], %90 {strides = array<i32>} : memref<40x128xf32, #tpu.memory_space<vmem>>, vector<8x128xf32>,
    %c2_i32_83 = arith.constant 2 : i32
    %c8_i32_84 = arith.constant 8 : i32
    %94 = arith.muli %c2_i32_83, %c8_i32_84 : i32
    %95 = tpu.assume_multiple %94, 8 : i32
    %96 = arith.index_cast %95 : i32 to index
    %c0_85 = arith.constant 0 : index
    %97 = vector.load %arg10[%96, %c0_85] : memref<40x128xf32, #tpu.memory_space<vmem>>, vector<8x128xf32>
    %c0_86 = arith.constant 0 : index
    %c0_87 = arith.constant 0 : index
    %98 = vector.load %arg11[%c0_86, %c0_87] : memref<8x128xf32, #tpu.memory_space<vmem>>, vector<8x128xf32>
    %cst_88 = arith.constant dense<0.000000e+00> : vector<8x128xf32>
    %99 = tpu.matmul %98, %71, %cst_88 {dimension_numbers = #tpu.dot_dimension_numbers<[1], [0], [0], [1], [0, 0, 1, 1], [], []>} : vector<8x128xf32>, vector<128x128xf32>, vector<8x128xf32> -> vector<8x128xf32>
    %100 = arith.addf %97, %99 : vector<8x128xf32>
    %101 = math.tanh %100 : vector<8x128xf32>
    %c0_89 = arith.constant 0 : index
    %c0_90 = arith.constant 0 : index
    %102 = vector.load %arg11[%c0_89, %c0_90] : memref<8x128xf32, #tpu.memory_space<vmem>>, vector<8x128xf32>
    tpu.vector_store %arg11[%c0_89, %c0_90], %101 {strides = array<i32>} : memref<8x128xf32, #tpu.memory_space<vmem>>, vector<8x128xf32>,
    %103 = arith.index_cast %95 : i32 to index
    %c0_91 = arith.constant 0 : index
    %104 = vector.load %arg10[%103, %c0_91] : memref<40x128xf32, #tpu.memory_space<vmem>>, vector<8x128xf32>
    tpu.vector_store %arg10[%103, %c0_91], %101 {strides = array<i32>} : memref<40x128xf32, #tpu.memory_space<vmem>>, vector<8x128xf32>,
    %c3_i32_92 = arith.constant 3 : i32
    %c8_i32_93 = arith.constant 8 : i32
    %105 = arith.muli %c3_i32_92, %c8_i32_93 : i32
    %106 = tpu.assume_multiple %105, 8 : i32
    %107 = arith.index_cast %106 : i32 to index
    %c0_94 = arith.constant 0 : index
    %108 = vector.load %arg10[%107, %c0_94] : memref<40x128xf32, #tpu.memory_space<vmem>>, vector<8x128xf32>
    %c0_95 = arith.constant 0 : index
    %c0_96 = arith.constant 0 : index
    %109 = vector.load %arg11[%c0_95, %c0_96] : memref<8x128xf32, #tpu.memory_space<vmem>>, vector<8x128xf32>
    %cst_97 = arith.constant dense<0.000000e+00> : vector<8x128xf32>
    %110 = tpu.matmul %109, %71, %cst_97 {dimension_numbers = #tpu.dot_dimension_numbers<[1], [0], [0], [1], [0, 0, 1, 1], [], []>} : vector<8x128xf32>, vector<128x128xf32>, vector<8x128xf32> -> vector<8x128xf32>
    %111 = arith.addf %108, %110 : vector<8x128xf32>
    %112 = math.tanh %111 : vector<8x128xf32>
    %c0_98 = arith.constant 0 : index
    %c0_99 = arith.constant 0 : index
    %113 = vector.load %arg11[%c0_98, %c0_99] : memref<8x128xf32, #tpu.memory_space<vmem>>, vector<8x128xf32>
    tpu.vector_store %arg11[%c0_98, %c0_99], %112 {strides = array<i32>} : memref<8x128xf32, #tpu.memory_space<vmem>>, vector<8x128xf32>,
    %114 = arith.index_cast %106 : i32 to index
    %c0_100 = arith.constant 0 : index
    %115 = vector.load %arg10[%114, %c0_100] : memref<40x128xf32, #tpu.memory_space<vmem>>, vector<8x128xf32>
    tpu.vector_store %arg10[%114, %c0_100], %112 {strides = array<i32>} : memref<40x128xf32, #tpu.memory_space<vmem>>, vector<8x128xf32>,
    %c4_i32_101 = arith.constant 4 : i32
    %c8_i32_102 = arith.constant 8 : i32
    %116 = arith.muli %c4_i32_101, %c8_i32_102 : i32
    %117 = tpu.assume_multiple %116, 8 : i32
    %118 = arith.index_cast %117 : i32 to index
    %c0_103 = arith.constant 0 : index
    %119 = vector.load %arg10[%118, %c0_103] : memref<40x128xf32, #tpu.memory_space<vmem>>, vector<8x128xf32>
    %c0_104 = arith.constant 0 : index
    %c0_105 = arith.constant 0 : index
    %120 = vector.load %arg11[%c0_104, %c0_105] : memref<8x128xf32, #tpu.memory_space<vmem>>, vector<8x128xf32>
    %cst_106 = arith.constant dense<0.000000e+00> : vector<8x128xf32>
    %121 = tpu.matmul %120, %71, %cst_106 {dimension_numbers = #tpu.dot_dimension_numbers<[1], [0], [0], [1], [0, 0, 1, 1], [], []>} : vector<8x128xf32>, vector<128x128xf32>, vector<8x128xf32> -> vector<8x128xf32>
    %122 = arith.addf %119, %121 : vector<8x128xf32>
    %123 = math.tanh %122 : vector<8x128xf32>
    %c0_107 = arith.constant 0 : index
    %c0_108 = arith.constant 0 : index
    %124 = vector.load %arg11[%c0_107, %c0_108] : memref<8x128xf32, #tpu.memory_space<vmem>>, vector<8x128xf32>
    tpu.vector_store %arg11[%c0_107, %c0_108], %123 {strides = array<i32>} : memref<8x128xf32, #tpu.memory_space<vmem>>, vector<8x128xf32>,
    %125 = arith.index_cast %117 : i32 to index
    %c0_109 = arith.constant 0 : index
    %126 = vector.load %arg10[%125, %c0_109] : memref<40x128xf32, #tpu.memory_space<vmem>>, vector<8x128xf32>
    tpu.vector_store %arg10[%125, %c0_109], %123 {strides = array<i32>} : memref<40x128xf32, #tpu.memory_space<vmem>>, vector<8x128xf32>,
    %c5_i32_110 = arith.constant 5 : i32
    return
  }
  func.func @transform_0(%arg0: i32) -> (i32, i32) {
    %c0_i32 = arith.constant 0 : i32
    %c0_i32_0 = arith.constant 0 : i32
    %c0_i32_1 = arith.constant 0 : i32
    return %c0_i32, %c0_i32_0 : i32, i32
  }
  func.func @transform_1(%arg0: i32) -> (i32, i32) {
    %c0_i32 = arith.constant 0 : i32
    %c0_i32_0 = arith.constant 0 : i32
    %c0_i32_1 = arith.constant 0 : i32
    return %c0_i32, %c0_i32_0 : i32, i32
  }
  func.func @transform_2(%arg0: i32) -> (i32, i32) {
    %c0_i32 = arith.constant 0 : i32
    %c0_i32_0 = arith.constant 0 : i32
    %c0_i32_1 = arith.constant 0 : i32
    return %c0_i32, %c0_i32_0 : i32, i32
  }
  func.func @transform_3(%arg0: i32) -> (i32, i32) {
    %c0_i32 = arith.constant 0 : i32
    %c0_i32_0 = arith.constant 0 : i32
    %c0_i32_1 = arith.constant 0 : i32
    return %c0_i32, %c0_i32_0 : i32, i32
  }
  func.func @transform_4(%arg0: i32) -> (i32, i32) {
    %c0_i32 = arith.constant 0 : i32
    %c0_i32_0 = arith.constant 0 : i32
    %c0_i32_1 = arith.constant 0 : i32
    return %c0_i32, %c0_i32_0 : i32, i32
  }
  func.func @transform_5(%arg0: i32) -> (i32, i32) {
    %c0_i32 = arith.constant 0 : i32
    %c0_i32_0 = arith.constant 0 : i32
    %c0_i32_1 = arith.constant 0 : i32
    return %c0_i32, %c0_i32_0 : i32, i32
  }
  func.func @transform_6(%arg0: i32) -> (i32, i32) {
    %c0_i32 = arith.constant 0 : i32
    %c0_i32_0 = arith.constant 0 : i32
    %c0_i32_1 = arith.constant 0 : i32
    return %c0_i32, %c0_i32_0 : i32, i32
  }
  func.func @transform_7(%arg0: i32) -> (i32, i32) {
    %c0_i32 = arith.constant 0 : i32
    %c0_i32_0 = arith.constant 0 : i32
    %c0_i32_1 = arith.constant 0 : i32
    return %c0_i32, %c0_i32_0 : i32, i32
  }
  func.func @transform_8(%arg0: i32) -> (i32, i32) {
    %c0_i32 = arith.constant 0 : i32
    %c0_i32_0 = arith.constant 0 : i32
    %c0_i32_1 = arith.constant 0 : i32
    return %c0_i32, %c0_i32_0 : i32, i32
  }
  func.func @transform_9(%arg0: i32) -> (i32, i32) {
    %c0_i32 = arith.constant 0 : i32
    %c0_i32_0 = arith.constant 0 : i32
    %c0_i32_1 = arith.constant 0 : i32
    return %c0_i32, %c0_i32_0 : i32, i32
  }
}

</mosaic_0001>

<llo_original>
// kernel: tpu_custom_call.1
$region0: #{tpu_custom_call.1}
  #allocation0 [shape = 'u32[]', space=smem, size = 0x4, offset = 0x4, fixed_abs, tag = 'smem constant byte address 0x4 - core index']
  #allocation1 [shape = 'u32[72,128]{1,0:T(1,128)}', space=vmem, size = 0x9000, scoped, tag = 'internal scratch']
  #allocation2 [shape = 'f32[8,128]{1,0:T(8,128)}', space=vmem, size = 0x1000, scoped, tag = 'scratch operand']
  #allocation3 [shape = 'f32[48,128]{1,0:T(8,128)}', space=vmem, size = 0x6000, scoped, tag = 'scratch operand']
  %s0 = inlined_call_operand.vmem [shape: f32[48,8], index: 0, kind: input, shape index: {}]
  %s1 = inlined_call_operand.vmem [shape: f32[40,8], index: 1, kind: input, shape index: {}]
  %s2 = inlined_call_operand.vmem [shape: f32[8,128], index: 2, kind: input, shape index: {}]
  %s3 = inlined_call_operand.vmem [shape: f32[8,128], index: 3, kind: input, shape index: {}]
  %s4 = inlined_call_operand.hbm [shape: f32[128,128], index: 4, kind: input, shape index: {}]
  %s5 = inlined_call_operand.vmem [shape: f32[1,128], index: 5, kind: input, shape index: {}]
  %s6 = inlined_call_operand.vmem [shape: f32[8,128], index: 6, kind: input, shape index: {}]
  %s7 = inlined_call_operand.hbm [shape: f32[128,128], index: 7, kind: input, shape index: {}]
  %s8 = inlined_call_operand.vmem [shape: f32[1,128], index: 8, kind: input, shape index: {}]
  %s9 = inlined_call_operand.hbm [shape: f32[40,128], index: 9, kind: output, shape index: {}]
  %s10 = sld [smem:[#allocation0]]
  $region54: #{tpu_custom_call.1} parent=0
    _
  %s12 = ssub.s32 1, %s10
  %s13 = scalar_select 0, %s12, %s10
  $region1: #{tpu_custom_call.1} parent=0
    #allocation4 [shape = 'u8[65536]{0}', space=vmem, size = 0x10000, scoped, tag = 'input window, operand 4, single buffered']
    #allocation5 [shape = 's32[1]{0}', space=sflag, size = 0x4, scoped, tag = 'scoped memory for tpu_custom_call.1']
    #allocation6 [shape = 's32[1]{0}', space=sflag, size = 0x4, scoped, tag = 'scoped memory for tpu_custom_call.1']
    #allocation7 [shape = 'u8[65536]{0}', space=vmem, size = 0x10000, scoped, tag = 'input window, operand 7, single buffered']
    #allocation8 [shape = 's32[1]{0}', space=sflag, size = 0x4, scoped, tag = 'scoped memory for tpu_custom_call.1']
    #allocation9 [shape = 'u8[20480]{0}', space=vmem, size = 0x5000, scoped, tag = 'output window, operand 0, single buffered']
    %14 = vsyncpa [#allocation5], 0
    %15 = vsyncpa [#allocation8], 0
    %16 = vsyncpa [#allocation6], 0
    // Predicated region
    $region2: #{tpu_custom_call.1} parent=1 // pred_check
      _
    $region3: #{tpu_custom_call.1} parent=1 // pred_check_branch
      %18 = sbr.rel (0) target = $region5
    $region4: #{tpu_custom_call.1} parent=1 // pred_region
      _
    $region5: #{tpu_custom_call.1} parent=1 // pred_fallthru
      _
    // Predicated region
    $region6: #{tpu_custom_call.1} parent=1 // pred_check
      _
    $region7: #{tpu_custom_call.1} parent=1 // pred_check_branch
      %20 = sbr.rel (0) target = $region9
    $region8: #{tpu_custom_call.1} parent=1 // pred_region
      _
    $region9: #{tpu_custom_call.1} parent=1 // pred_fallthru
      _
    // Predicated region
    $region10: #{tpu_custom_call.1} parent=1 // pred_check
      _
    $region11: #{tpu_custom_call.1} parent=1 // pred_check_branch
      %22 = sbr.rel (0) target = $region13
    $region12: #{tpu_custom_call.1} parent=1 // pred_region
      _
    $region13: #{tpu_custom_call.1} parent=1 // pred_fallthru
      _
    // Predicated region
    $region14: #{tpu_custom_call.1} parent=1 // pred_check
      _
    $region15: #{tpu_custom_call.1} parent=1 // pred_check_branch
      %24 = sbr.rel (0) target = $region17
    $region16: #{tpu_custom_call.1} parent=1 // pred_region
      _
    $region17: #{tpu_custom_call.1} parent=1 // pred_fallthru
      _
    // Predicated region
    $region18: #{tpu_custom_call.1} parent=1 // pred_check
      _
    $region19: #{tpu_custom_call.1} parent=1 // pred_check_branch
      %26 = sbr.rel (0) target = $region21
    $region20: #{tpu_custom_call.1} parent=1 // pred_region
      %28 = vsyncadd [#allocation5], 0
      %s29 = sshll.u32 %s4, 4
      %s30 = int_to_ptr.hbm [resolvable:$true] %s29
      %s31 = sshll.u32 [#allocation4], 4
      %s32 = int_to_ptr.vmem [resolvable:$true] %s31
      %37 = dma.hbm_to_vmem [thread:$0]  %s30, 2048, %s32, [#allocation5], 128, 128, 8
    $region21: #{tpu_custom_call.1} parent=1 // pred_fallthru
      _
    // Predicated region
    $region22: #{tpu_custom_call.1} parent=1 // pred_check
      _
    $region23: #{tpu_custom_call.1} parent=1 // pred_check_branch
      %39 = sbr.rel (0) target = $region25
    $region24: #{tpu_custom_call.1} parent=1 // pred_region
      _
    $region25: #{tpu_custom_call.1} parent=1 // pred_fallthru
      _
    // Predicated region
    $region26: #{tpu_custom_call.1} parent=1 // pred_check
      _
    $region27: #{tpu_custom_call.1} parent=1 // pred_check_branch
      %41 = sbr.rel (0) target = $region29
    $region28: #{tpu_custom_call.1} parent=1 // pred_region
      _
    $region29: #{tpu_custom_call.1} parent=1 // pred_fallthru
      _
    // Predicated region
    $region30: #{tpu_custom_call.1} parent=1 // pred_check
      _
    $region31: #{tpu_custom_call.1} parent=1 // pred_check_branch
      %43 = sbr.rel (0) target = $region33
    $region32: #{tpu_custom_call.1} parent=1 // pred_region
      %45 = vsyncadd [#allocation8], 0
      %s46 = sshll.u32 %s7, 4
      %s47 = int_to_ptr.hbm [resolvable:$true] %s46
      %s48 = sshll.u32 [#allocation7], 4
      %s49 = int_to_ptr.vmem [resolvable:$true] %s48
      %54 = dma.hbm_to_vmem [thread:$0]  %s47, 2048, %s49, [#allocation8], 128, 128, 8
    $region33: #{tpu_custom_call.1} parent=1 // pred_fallthru
      _
    // Predicated region
    $region34: #{tpu_custom_call.1} parent=1 // pred_check
      _
    $region35: #{tpu_custom_call.1} parent=1 // pred_check_branch
      %56 = sbr.rel (0) target = $region37
    $region36: #{tpu_custom_call.1} parent=1 // pred_region
      _
    $region37: #{tpu_custom_call.1} parent=1 // pred_fallthru
      _
    // Predicated region
    $region38: #{tpu_custom_call.1} parent=1 // pred_check
      _
    $region39: #{tpu_custom_call.1} parent=1 // pred_check_branch
      %58 = sbr.rel (0) target = $region41
    $region40: #{tpu_custom_call.1} parent=1 // pred_region
      %60 = dma.done [#allocation5], 2048
    $region41: #{tpu_custom_call.1} parent=1 // pred_fallthru
      _
    // Predicated region
    $region42: #{tpu_custom_call.1} parent=1 // pred_check
      _
    $region43: #{tpu_custom_call.1} parent=1 // pred_check_branch
      %62 = sbr.rel (0) target = $region45
    $region44: #{tpu_custom_call.1} parent=1 // pred_region
      %64 = dma.done [#allocation8], 2048
    $region45: #{tpu_custom_call.1} parent=1 // pred_fallthru
      _
    %v65 = vld [vmem:[%s0] sm:$0xff]
    %v66 = vld [vmem:[%s0 + $0x8] sm:$0xff]
    %v67 = vld [vmem:[%s0 + $0x10] sm:$0xff]
    %v68 = vld [vmem:[%s0 + $0x18] sm:$0xff]
    %v69 = vld [vmem:[%s0 + $0x20] sm:$0xff]
    %v70 = vld [vmem:[%s0 + $0x28] sm:$0xff]
    %v71 = vld [vmem:[%s3] sm:$0xff]
    %v72 = vld [vmem:[%s5] sm:$0x1]
    %v74 = vperm.slane %v72, 0
    %vm76 = vcmask 64512
    %v78 = vsel %vm76, %v65, 0
    %v81 = vsel %vm76, %v66, 0
    %v84 = vsel %vm76, %v67, 0
    %v87 = vsel %vm76, %v68, 0
    %v90 = vsel %vm76, %v69, 0
    %v93 = vsel %vm76, %v70, 0
    %95 = vmatpush.msra.mxu0 0.0
    %96 = vmatpush.msra.mxu0 0.0
    %97 = vmatpush.msra.mxu0 0.0
    %98 = vmatpush.msra.mxu0 0.0
    %99 = vmatpush.msra.mxu0 0.0
    %100 = vmatpush.msra.mxu0 0.0
    %101 = vmatpush.msra.mxu0 0.0
    %102 = vmatpush.msra.mxu0 0.0
    %103 = vmatpush.msra.mxu0 0.0
    %104 = vmatpush.msra.mxu0 0.0
    %105 = vmatpush.msra.mxu0 0.0
    %106 = vmatpush.msra.mxu0 0.0
    %107 = vmatpush.msra.mxu0 0.0
    %108 = vmatpush.msra.mxu0 0.0
    %109 = vmatpush.msra.mxu0 0.0
    %110 = vmatpush.msra.mxu0 %v71
    %111 = vmatmul.f32.gmra.mxu0 %v78
    %v112 = vpop.f32.mrf.mxu0
    %v113 = vadd.f32 %v74, %v112
    %114 = vmatmul.f32.gmra.mxu0 %v81
    %v115 = vpop.f32.mrf.mxu0
    %v116 = vadd.f32 %v74, %v115
    %117 = vmatmul.f32.gmra.mxu0 %v84
    %v118 = vpop.f32.mrf.mxu0
    %v119 = vadd.f32 %v74, %v118
    %120 = vmatmul.f32.gmra.mxu0 %v87
    %v121 = vpop.f32.mrf.mxu0
    %v122 = vadd.f32 %v74, %v121
    %123 = vmatmul.f32.gmra.mxu0 %v90
    %v124 = vpop.f32.mrf.mxu0
    %v125 = vadd.f32 %v74, %v124
    %126 = vmatmul.f32.gmra.mxu0 %v93
    %v127 = vpop.f32.mrf.mxu0
    %v128 = vadd.f32 %v74, %v127
    %129 = vdwg.mxu0
    %130 = vst [vmem:[#allocation3] sm:$0xff] %v113
    %131 = vst [vmem:[#allocation3 + $0x8] sm:$0xff] %v116
    %132 = vst [vmem:[#allocation3 + $0x10] sm:$0xff] %v119
    %133 = vst [vmem:[#allocation3 + $0x18] sm:$0xff] %v122
    %134 = vst [vmem:[#allocation3 + $0x20] sm:$0xff] %v125
    %135 = vst [vmem:[#allocation3 + $0x28] sm:$0xff] %v128
    %v136 = vld [vmem:[%s1] sm:$0xff]
    %v137 = vld [vmem:[%s1 + $0x8] sm:$0xff]
    %v138 = vld [vmem:[%s1 + $0x10] sm:$0xff]
    %v139 = vld [vmem:[%s1 + $0x18] sm:$0xff]
    %v140 = vld [vmem:[%s1 + $0x20] sm:$0xff]
    %v141 = vld [vmem:[%s6] sm:$0xff]
    %v142 = vld [vmem:[%s8] sm:$0x1]
    %v144 = vperm.slane %v142, 0
    %v147 = vsel %vm76, %v136, 0
    %v150 = vsel %vm76, %v137, 0
    %v153 = vsel %vm76, %v138, 0
    %v156 = vsel %vm76, %v139, 0
    %v159 = vsel %vm76, %v140, 0
    %161 = vmatpush.msra.mxu0 0.0
    %162 = vmatpush.msra.mxu0 0.0
    %163 = vmatpush.msra.mxu0 0.0
    %164 = vmatpush.msra.mxu0 0.0
    %165 = vmatpush.msra.mxu0 0.0
    %166 = vmatpush.msra.mxu0 0.0
    %167 = vmatpush.msra.mxu0 0.0
    %168 = vmatpush.msra.mxu0 0.0
    %169 = vmatpush.msra.mxu0 0.0
    %170 = vmatpush.msra.mxu0 0.0
    %171 = vmatpush.msra.mxu0 0.0
    %172 = vmatpush.msra.mxu0 0.0
    %173 = vmatpush.msra.mxu0 0.0
    %174 = vmatpush.msra.mxu0 0.0
    %175 = vmatpush.msra.mxu0 0.0
    %176 = vmatpush.msra.mxu0 %v141
    %177 = vmatmul.f32.gmra.mxu0 %v147
    %v178 = vpop.f32.mrf.mxu0
    %v179 = vadd.f32 %v144, %v178
    %180 = vmatmul.f32.gmra.mxu0 %v150
    %v181 = vpop.f32.mrf.mxu0
    %v182 = vadd.f32 %v144, %v181
    %183 = vmatmul.f32.gmra.mxu0 %v153
    %v184 = vpop.f32.mrf.mxu0
    %v185 = vadd.f32 %v144, %v184
    %186 = vmatmul.f32.gmra.mxu0 %v156
    %v187 = vpop.f32.mrf.mxu0
    %v188 = vadd.f32 %v144, %v187
    %189 = vmatmul.f32.gmra.mxu0 %v159
    %v190 = vpop.f32.mrf.mxu0
    %v191 = vadd.f32 %v144, %v190
    %192 = vdwg.mxu0
    %193 = vst [vmem:[#allocation9] sm:$0xff] %v179
    %194 = vst [vmem:[#allocation9 + $0x8] sm:$0xff] %v182
    %195 = vst [vmem:[#allocation9 + $0x10] sm:$0xff] %v185
    %196 = vst [vmem:[#allocation9 + $0x18] sm:$0xff] %v188
    %197 = vst [vmem:[#allocation9 + $0x20] sm:$0xff] %v191
    %v198 = vld [vmem:[%s2] sm:$0xff]
    %199 = vst [vmem:[#allocation2] sm:$0xff] %v198
    %v200 = vld [vmem:[#allocation4] sm:$0xff]
    %v201 = vld [vmem:[#allocation4 + $0x8] sm:$0xff]
    %v202 = vld [vmem:[#allocation4 + $0x10] sm:$0xff]
    %v203 = vld [vmem:[#allocation4 + $0x18] sm:$0xff]
    %v204 = vld [vmem:[#allocation4 + $0x20] sm:$0xff]
    %v205 = vld [vmem:[#allocation4 + $0x28] sm:$0xff]
    %v206 = vld [vmem:[#allocation4 + $0x30] sm:$0xff]
    %v207 = vld [vmem:[#allocation4 + $0x38] sm:$0xff]
    %v208 = vld [vmem:[#allocation4 + $0x40] sm:$0xff]
    %v209 = vld [vmem:[#allocation4 + $0x48] sm:$0xff]
    %v210 = vld [vmem:[#allocation4 + $0x50] sm:$0xff]
    %v211 = vld [vmem:[#allocation4 + $0x58] sm:$0xff]
    %v212 = vld [vmem:[#allocation4 + $0x60] sm:$0xff]
    %v213 = vld [vmem:[#allocation4 + $0x68] sm:$0xff]
    %v214 = vld [vmem:[#allocation4 + $0x70] sm:$0xff]
    %v215 = vld [vmem:[#allocation4 + $0x78] sm:$0xff]
    %v216 = vld [vmem:[#allocation3] sm:$0xff]
    %v217 = vld [vmem:[#allocation2] sm:$0xff]
    %218 = vmatpush.msra.mxu0 %v215
    %219 = vmatpush.msra.mxu0 %v214
    %220 = vmatpush.msra.mxu0 %v213
    %221 = vmatpush.msra.mxu0 %v212
    %222 = vmatpush.msra.mxu0 %v211
    %223 = vmatpush.msra.mxu0 %v210
    %224 = vmatpush.msra.mxu0 %v209
    %225 = vmatpush.msra.mxu0 %v208
    %226 = vmatpush.msra.mxu0 %v207
    %227 = vmatpush.msra.mxu0 %v206
    %228 = vmatpush.msra.mxu0 %v205
    %229 = vmatpush.msra.mxu0 %v204
    %230 = vmatpush.msra.mxu0 %v203
    %231 = vmatpush.msra.mxu0 %v202
    %232 = vmatpush.msra.mxu0 %v201
    %233 = vmatpush.msra.mxu0 %v200
    %234 = vmatmul.f32.gmra.mxu0 %v217
    %v235 = vpop.f32.mrf.mxu0
    %v236 = vadd.f32 0.0, %v235
    %237 = vdwg.mxu0
    %v238 = vadd.f32 %v216, %v236
    %v239 = vtanh.pop %v238
    %240 = vst [vmem:[#allocation2] sm:$0xff] %v239
    %s241 = scalar_lea.vmem [#allocation3], 8
    %v242 = vld [vmem:[%s241] sm:$0xff]
    %v243 = vld [vmem:[#allocation2] sm:$0xff]
    %244 = vmatpush.msra.mxu0 %v215
    %245 = vmatpush.msra.mxu0 %v214
    %246 = vmatpush.msra.mxu0 %v213
    %247 = vmatpush.msra.mxu0 %v212
    %248 = vmatpush.msra.mxu0 %v211
    %249 = vmatpush.msra.mxu0 %v210
    %250 = vmatpush.msra.mxu0 %v209
    %251 = vmatpush.msra.mxu0 %v208
    %252 = vmatpush.msra.mxu0 %v207
    %253 = vmatpush.msra.mxu0 %v206
    %254 = vmatpush.msra.mxu0 %v205
    %255 = vmatpush.msra.mxu0 %v204
    %256 = vmatpush.msra.mxu0 %v203
    %257 = vmatpush.msra.mxu0 %v202
    %258 = vmatpush.msra.mxu0 %v201
    %259 = vmatpush.msra.mxu0 %v200
    %260 = vmatmul.f32.gmra.mxu0 %v243
    %v261 = vpop.f32.mrf.mxu0
    %v262 = vadd.f32 0.0, %v261
    %263 = vdwg.mxu0
    %v264 = vadd.f32 %v242, %v262
    %v265 = vtanh.pop %v264
    %266 = vst [vmem:[#allocation2] sm:$0xff] %v265
    %s267 = scalar_lea.vmem [#allocation3], 16
    %v268 = vld [vmem:[%s267] sm:$0xff]
    %v269 = vld [vmem:[#allocation2] sm:$0xff]
    %270 = vmatpush.msra.mxu0 %v215
    %271 = vmatpush.msra.mxu0 %v214
    %272 = vmatpush.msra.mxu0 %v213
    %273 = vmatpush.msra.mxu0 %v212
    %274 = vmatpush.msra.mxu0 %v211
    %275 = vmatpush.msra.mxu0 %v210
    %276 = vmatpush.msra.mxu0 %v209
    %277 = vmatpush.msra.mxu0 %v208
    %278 = vmatpush.msra.mxu0 %v207
    %279 = vmatpush.msra.mxu0 %v206
    %280 = vmatpush.msra.mxu0 %v205
    %281 = vmatpush.msra.mxu0 %v204
    %282 = vmatpush.msra.mxu0 %v203
    %283 = vmatpush.msra.mxu0 %v202
    %284 = vmatpush.msra.mxu0 %v201
    %285 = vmatpush.msra.mxu0 %v200
    %286 = vmatmul.f32.gmra.mxu0 %v269
    %v287 = vpop.f32.mrf.mxu0
    %v288 = vadd.f32 0.0, %v287
    %289 = vdwg.mxu0
    %v290 = vadd.f32 %v268, %v288
    %v291 = vtanh.pop %v290
    %292 = vst [vmem:[#allocation2] sm:$0xff] %v291
    %s293 = scalar_lea.vmem [#allocation3], 24
    %v294 = vld [vmem:[%s293] sm:$0xff]
    %v295 = vld [vmem:[#allocation2] sm:$0xff]
    %296 = vmatpush.msra.mxu0 %v215
    %297 = vmatpush.msra.mxu0 %v214
    %298 = vmatpush.msra.mxu0 %v213
    %299 = vmatpush.msra.mxu0 %v212
    %300 = vmatpush.msra.mxu0 %v211
    %301 = vmatpush.msra.mxu0 %v210
    %302 = vmatpush.msra.mxu0 %v209
    %303 = vmatpush.msra.mxu0 %v208
    %304 = vmatpush.msra.mxu0 %v207
    %305 = vmatpush.msra.mxu0 %v206
    %306 = vmatpush.msra.mxu0 %v205
    %307 = vmatpush.msra.mxu0 %v204
    %308 = vmatpush.msra.mxu0 %v203
    %309 = vmatpush.msra.mxu0 %v202
    %310 = vmatpush.msra.mxu0 %v201
    %311 = vmatpush.msra.mxu0 %v200
    %312 = vmatmul.f32.gmra.mxu0 %v295
    %v313 = vpop.f32.mrf.mxu0
    %v314 = vadd.f32 0.0, %v313
    %315 = vdwg.mxu0
    %v316 = vadd.f32 %v294, %v314
    %v317 = vtanh.pop %v316
    %318 = vst [vmem:[#allocation2] sm:$0xff] %v317
    %s319 = scalar_lea.vmem [#allocation3], 32
    %v320 = vld [vmem:[%s319] sm:$0xff]
    %v321 = vld [vmem:[#allocation2] sm:$0xff]
    %322 = vmatpush.msra.mxu0 %v215
    %323 = vmatpush.msra.mxu0 %v214
    %324 = vmatpush.msra.mxu0 %v213
    %325 = vmatpush.msra.mxu0 %v212
    %326 = vmatpush.msra.mxu0 %v211
    %327 = vmatpush.msra.mxu0 %v210
    %328 = vmatpush.msra.mxu0 %v209
    %329 = vmatpush.msra.mxu0 %v208
    %330 = vmatpush.msra.mxu0 %v207
    %331 = vmatpush.msra.mxu0 %v206
    %332 = vmatpush.msra.mxu0 %v205
    %333 = vmatpush.msra.mxu0 %v204
    %334 = vmatpush.msra.mxu0 %v203
    %335 = vmatpush.msra.mxu0 %v202
    %336 = vmatpush.msra.mxu0 %v201
    %337 = vmatpush.msra.mxu0 %v200
    %338 = vmatmul.f32.gmra.mxu0 %v321
    %v339 = vpop.f32.mrf.mxu0
    %v340 = vadd.f32 0.0, %v339
    %341 = vdwg.mxu0
    %v342 = vadd.f32 %v320, %v340
    %v343 = vtanh.pop %v342
    %344 = vst [vmem:[#allocation2] sm:$0xff] %v343
    %s345 = scalar_lea.vmem [#allocation3], 40
    %v346 = vld [vmem:[%s345] sm:$0xff]
    %v347 = vld [vmem:[#allocation2] sm:$0xff]
    %348 = vmatpush.msra.mxu0 %v215
    %349 = vmatpush.msra.mxu0 %v214
    %350 = vmatpush.msra.mxu0 %v213
    %351 = vmatpush.msra.mxu0 %v212
    %352 = vmatpush.msra.mxu0 %v211
    %353 = vmatpush.msra.mxu0 %v210
    %354 = vmatpush.msra.mxu0 %v209
    %355 = vmatpush.msra.mxu0 %v208
    %356 = vmatpush.msra.mxu0 %v207
    %357 = vmatpush.msra.mxu0 %v206
    %358 = vmatpush.msra.mxu0 %v205
    %359 = vmatpush.msra.mxu0 %v204
    %360 = vmatpush.msra.mxu0 %v203
    %361 = vmatpush.msra.mxu0 %v202
    %362 = vmatpush.msra.mxu0 %v201
    %363 = vmatpush.msra.mxu0 %v200
    %364 = vmatmul.f32.gmra.mxu0 %v347
    %v365 = vpop.f32.mrf.mxu0
    %v366 = vadd.f32 0.0, %v365
    %367 = vdwg.mxu0
    %v368 = vadd.f32 %v346, %v366
    %v369 = vtanh.pop %v368
    %370 = vst [vmem:[#allocation2] sm:$0xff] %v369
    %v371 = vld [vmem:[#allocation7] sm:$0xff]
    %v372 = vld [vmem:[#allocation7 + $0x8] sm:$0xff]
    %v373 = vld [vmem:[#allocation7 + $0x10] sm:$0xff]
    %v374 = vld [vmem:[#allocation7 + $0x18] sm:$0xff]
    %v375 = vld [vmem:[#allocation7 + $0x20] sm:$0xff]
    %v376 = vld [vmem:[#allocation7 + $0x28] sm:$0xff]
    %v377 = vld [vmem:[#allocation7 + $0x30] sm:$0xff]
    %v378 = vld [vmem:[#allocation7 + $0x38] sm:$0xff]
    %v379 = vld [vmem:[#allocation7 + $0x40] sm:$0xff]
    %v380 = vld [vmem:[#allocation7 + $0x48] sm:$0xff]
    %v381 = vld [vmem:[#allocation7 + $0x50] sm:$0xff]
    %v382 = vld [vmem:[#allocation7 + $0x58] sm:$0xff]
    %v383 = vld [vmem:[#allocation7 + $0x60] sm:$0xff]
    %v384 = vld [vmem:[#allocation7 + $0x68] sm:$0xff]
    %v385 = vld [vmem:[#allocation7 + $0x70] sm:$0xff]
    %v386 = vld [vmem:[#allocation7 + $0x78] sm:$0xff]
    %v387 = vld [vmem:[#allocation9] sm:$0xff]
    %v388 = vld [vmem:[#allocation2] sm:$0xff]
    %389 = vmatpush.msra.mxu0 %v386
    %390 = vmatpush.msra.mxu0 %v385
    %391 = vmatpush.msra.mxu0 %v384
    %392 = vmatpush.msra.mxu0 %v383
    %393 = vmatpush.msra.mxu0 %v382
    %394 = vmatpush.msra.mxu0 %v381
    %395 = vmatpush.msra.mxu0 %v380
    %396 = vmatpush.msra.mxu0 %v379
    %397 = vmatpush.msra.mxu0 %v378
    %398 = vmatpush.msra.mxu0 %v377
    %399 = vmatpush.msra.mxu0 %v376
    %400 = vmatpush.msra.mxu0 %v375
    %401 = vmatpush.msra.mxu0 %v374
    %402 = vmatpush.msra.mxu0 %v373
    %403 = vmatpush.msra.mxu0 %v372
    %404 = vmatpush.msra.mxu0 %v371
    %405 = vmatmul.f32.gmra.mxu0 %v388
    %v406 = vpop.f32.mrf.mxu0
    %v407 = vadd.f32 0.0, %v406
    %408 = vdwg.mxu0
    %v409 = vadd.f32 %v387, %v407
    %v410 = vtanh.pop %v409
    %411 = vst [vmem:[#allocation2] sm:$0xff] %v410
    %412 = vst [vmem:[#allocation9] sm:$0xff] %v410
    %s413 = scalar_lea.vmem [#allocation9], 8
    %v414 = vld [vmem:[%s413] sm:$0xff]
    %v415 = vld [vmem:[#allocation2] sm:$0xff]
    %416 = vmatpush.msra.mxu0 %v386
    %417 = vmatpush.msra.mxu0 %v385
    %418 = vmatpush.msra.mxu0 %v384
    %419 = vmatpush.msra.mxu0 %v383
    %420 = vmatpush.msra.mxu0 %v382
    %421 = vmatpush.msra.mxu0 %v381
    %422 = vmatpush.msra.mxu0 %v380
    %423 = vmatpush.msra.mxu0 %v379
    %424 = vmatpush.msra.mxu0 %v378
    %425 = vmatpush.msra.mxu0 %v377
    %426 = vmatpush.msra.mxu0 %v376
    %427 = vmatpush.msra.mxu0 %v375
    %428 = vmatpush.msra.mxu0 %v374
    %429 = vmatpush.msra.mxu0 %v373
    %430 = vmatpush.msra.mxu0 %v372
    %431 = vmatpush.msra.mxu0 %v371
    %432 = vmatmul.f32.gmra.mxu0 %v415
    %v433 = vpop.f32.mrf.mxu0
    %v434 = vadd.f32 0.0, %v433
    %435 = vdwg.mxu0
    %v436 = vadd.f32 %v414, %v434
    %v437 = vtanh.pop %v436
    %438 = vst [vmem:[#allocation2] sm:$0xff] %v437
    %439 = vst [vmem:[%s413] sm:$0xff] %v437
    %s440 = scalar_lea.vmem [#allocation9], 16
    %v441 = vld [vmem:[%s440] sm:$0xff]
    %v442 = vld [vmem:[#allocation2] sm:$0xff]
    %443 = vmatpush.msra.mxu0 %v386
    %444 = vmatpush.msra.mxu0 %v385
    %445 = vmatpush.msra.mxu0 %v384
    %446 = vmatpush.msra.mxu0 %v383
    %447 = vmatpush.msra.mxu0 %v382
    %448 = vmatpush.msra.mxu0 %v381
    %449 = vmatpush.msra.mxu0 %v380
    %450 = vmatpush.msra.mxu0 %v379
    %451 = vmatpush.msra.mxu0 %v378
    %452 = vmatpush.msra.mxu0 %v377
    %453 = vmatpush.msra.mxu0 %v376
    %454 = vmatpush.msra.mxu0 %v375
    %455 = vmatpush.msra.mxu0 %v374
    %456 = vmatpush.msra.mxu0 %v373
    %457 = vmatpush.msra.mxu0 %v372
    %458 = vmatpush.msra.mxu0 %v371
    %459 = vmatmul.f32.gmra.mxu0 %v442
    %v460 = vpop.f32.mrf.mxu0
    %v461 = vadd.f32 0.0, %v460
    %462 = vdwg.mxu0
    %v463 = vadd.f32 %v441, %v461
    %v464 = vtanh.pop %v463
    %465 = vst [vmem:[#allocation2] sm:$0xff] %v464
    %466 = vst [vmem:[%s440] sm:$0xff] %v464
    %s467 = scalar_lea.vmem [#allocation9], 24
    %v468 = vld [vmem:[%s467] sm:$0xff]
    %v469 = vld [vmem:[#allocation2] sm:$0xff]
    %470 = vmatpush.msra.mxu0 %v386
    %471 = vmatpush.msra.mxu0 %v385
    %472 = vmatpush.msra.mxu0 %v384
    %473 = vmatpush.msra.mxu0 %v383
    %474 = vmatpush.msra.mxu0 %v382
    %475 = vmatpush.msra.mxu0 %v381
    %476 = vmatpush.msra.mxu0 %v380
    %477 = vmatpush.msra.mxu0 %v379
    %478 = vmatpush.msra.mxu0 %v378
    %479 = vmatpush.msra.mxu0 %v377
    %480 = vmatpush.msra.mxu0 %v376
    %481 = vmatpush.msra.mxu0 %v375
    %482 = vmatpush.msra.mxu0 %v374
    %483 = vmatpush.msra.mxu0 %v373
    %484 = vmatpush.msra.mxu0 %v372
    %485 = vmatpush.msra.mxu0 %v371
    %486 = vmatmul.f32.gmra.mxu0 %v469
    %v487 = vpop.f32.mrf.mxu0
    %v488 = vadd.f32 0.0, %v487
    %489 = vdwg.mxu0
    %v490 = vadd.f32 %v468, %v488
    %v491 = vtanh.pop %v490
    %492 = vst [vmem:[#allocation2] sm:$0xff] %v491
    %493 = vst [vmem:[%s467] sm:$0xff] %v491
    %s494 = scalar_lea.vmem [#allocation9], 32
    %v495 = vld [vmem:[%s494] sm:$0xff]
    %v496 = vld [vmem:[#allocation2] sm:$0xff]
    %497 = vmatpush.msra.mxu0 %v386
    %498 = vmatpush.msra.mxu0 %v385
    %499 = vmatpush.msra.mxu0 %v384
    %500 = vmatpush.msra.mxu0 %v383
    %501 = vmatpush.msra.mxu0 %v382
    %502 = vmatpush.msra.mxu0 %v381
    %503 = vmatpush.msra.mxu0 %v380
    %504 = vmatpush.msra.mxu0 %v379
    %505 = vmatpush.msra.mxu0 %v378
    %506 = vmatpush.msra.mxu0 %v377
    %507 = vmatpush.msra.mxu0 %v376
    %508 = vmatpush.msra.mxu0 %v375
    %509 = vmatpush.msra.mxu0 %v374
    %510 = vmatpush.msra.mxu0 %v373
    %511 = vmatpush.msra.mxu0 %v372
    %512 = vmatpush.msra.mxu0 %v371
    %513 = vmatmul.f32.gmra.mxu0 %v496
    %v514 = vpop.f32.mrf.mxu0
    %v515 = vadd.f32 0.0, %v514
    %516 = vdwg.mxu0
    %v517 = vadd.f32 %v495, %v515
    %v518 = vtanh.pop %v517
    %519 = vst [vmem:[#allocation2] sm:$0xff] %v518
    %520 = vst [vmem:[%s494] sm:$0xff] %v518
    // Predicated region
    $region46: #{tpu_custom_call.1} parent=1 // pred_check
      _
    $region47: #{tpu_custom_call.1} parent=1 // pred_check_branch
      %522 = sbr.rel (0) target = $region49
    $region48: #{tpu_custom_call.1} parent=1 // pred_region
      %524 = vsyncadd [#allocation6], 0
      %s525 = sshll.u32 [#allocation9], 4
      %s526 = int_to_ptr.vmem [resolvable:$true] %s525
      %s527 = sshll.u32 %s9, 4
      %s528 = int_to_ptr.hbm [resolvable:$true] %s527
      %533 = dma.vmem_to_hbm [thread:$0]  %s526, 640, %s528, [#allocation6], 128, 128, 8
    $region49: #{tpu_custom_call.1} parent=1 // pred_fallthru
      _
    // Predicated region
    $region50: #{tpu_custom_call.1} parent=1 // pred_check
      _
    $region51: #{tpu_custom_call.1} parent=1 // pred_check_branch
      %535 = sbr.rel (0) target = $region53
    $region52: #{tpu_custom_call.1} parent=1 // pred_region
      %537 = dma.done [#allocation6], 640
    $region53: #{tpu_custom_call.1} parent=1 // pred_fallthru
      _
    %538 = vsyncpa [#allocation5], 1
    %539 = vsyncpa [#allocation8], 1
    %540 = vsyncpa [#allocation6], 1

</llo_original>
